<compile_context>
chip_gen: v5e
topology: v5e:2x2
jax: 0.10.0
libtpu: 0.0.40
codegen_flags: <defaults>
</compile_context>

<pallas_src>
import functools

import jax
import jax.numpy as jnp
from jax.experimental import pallas as pl
from jax.experimental.pallas import tpu as pltpu

IGNORE_INDEX = -100


def _ce_kernel(logits_ref, labels_ref, out_ref, m_ref, s_ref, t_ref,
               *, vocab_size, block_v, mask_vocab_tail):
    """One (seq_tile, batch, vocab_tile) grid step.

    logits_ref: (TM, TV) logits tile (batch dim squeezed via None block dim)
    labels_ref: (TM, 1)  int32 shifted labels (padded rows hold IGNORE_INDEX)
    out_ref:    (TM, 1)  f32 per-position loss summed over batch
                         (resident across the batch/vocab grid axes)
    m/s/t_ref:  (TM, 1)  f32 online-LSE state: running max / running sum(exp) /
                         target-logit accumulator
    """
    b = pl.program_id(1)
    vi = pl.program_id(2)
    nv = pl.num_programs(2)

    @pl.when((b == 0) & (vi == 0))
    def _():
        out_ref[...] = jnp.zeros_like(out_ref)

    @pl.when(vi == 0)
    def _():
        m_ref[...] = jnp.full(m_ref.shape, -jnp.inf, jnp.float32)
        s_ref[...] = jnp.zeros(s_ref.shape, jnp.float32)
        t_ref[...] = jnp.zeros(t_ref.shape, jnp.float32)

    x = logits_ref[...].astype(jnp.float32)        # (TM, TV)
    lbl = labels_ref[...]                          # (TM, 1) int32

    # Tile-local lane index; fold the global vocab offset into the small
    # (TM,1)/scalar operands instead of spending a per-element add on it.
    col = jax.lax.broadcasted_iota(jnp.int32, x.shape, 1)
    v_off = vi * block_v

    if mask_vocab_tail:
        # Ragged last vocab tile: padded lanes must not enter the LSE.
        # (For earlier tiles the threshold exceeds TV, so the mask is all-true.)
        x = jnp.where(col < (vocab_size - v_off), x, -jnp.inf)

    # Online (streaming) log-sum-exp over the vocab axis.
    m_prev = m_ref[...]
    m_new = jnp.maximum(m_prev, jnp.max(x, axis=-1, keepdims=True))
    s_ref[...] = (s_ref[...] * jnp.exp(m_prev - m_new)
                  + jnp.sum(jnp.exp(x - m_new), axis=-1, keepdims=True))
    m_ref[...] = m_new

    # Target-logit gather via compare+select. IGNORE_INDEX and padded lanes
    # never match because (lbl - v_off) falls outside [0, TV) there.
    t_ref[...] += jnp.sum(jnp.where(col == (lbl - v_off), x, 0.0),
                          axis=-1, keepdims=True)

    @pl.when(vi == nv - 1)
    def _():
        lse = jnp.log(s_ref[...]) + m_ref[...]
        valid = lbl != IGNORE_INDEX
        # NaN/Inf from garbage seq-padded rows is discarded by the select.
        out_ref[...] += jnp.where(valid, lse - t_ref[...], 0.0)


def _round_up(x, m):
    return ((x + m - 1) // m) * m


def _cdiv(a, b):
    return (a + b - 1) // b


def _pick_vocab_tile(vocab_size, tv_max=4096, tv_min=1024):
    """Pick the vocab (lane) tile. Prefer a 128-multiple divisor of V so the
    ragged-tail mask (2 extra VALU ops per streamed element) is never needed."""
    if vocab_size <= tv_max:
        return vocab_size, False
    for cand in range(tv_max, tv_min - 1, -128):
        if vocab_size % cand == 0:
            return cand, False
    return tv_max, True


@jax.jit
def sample_averaged_cross_entropy_loss(logits, labels):
    """logits: (B, S, V) float; labels: (B, S) int.

    Returns a float32 vector of shape (S-1,): per-position cross entropy
    averaged over the batch (matching the PyTorch module's forward).
    """
    B, S, V = logits.shape
    n_rows = S - 1  # predicted positions

    row_align = 16 if logits.dtype == jnp.bfloat16 else 8

    tv, mask_vocab_tail = _pick_vocab_tile(V)

    # ~1M f32 elements per (TM, TV) working tile: double-buffered logits block
    # plus in-kernel f32 temporaries fit comfortably in 32 MiB scoped VMEM.
    tm_cap = min(1024, max(256, _round_up(_cdiv(1 << 20, tv), row_align)))
    tm_aligned = _round_up(n_rows, row_align)
    if tm_aligned > S:
        tm = S                      # single full-extent seq block (layout-legal)
    else:
        tm = min(tm_cap, tm_aligned)

    n_seq_tiles = _cdiv(n_rows, tm)
    n_vocab_tiles = _cdiv(V, tv)
    s_pad = n_seq_tiles * tm

    # Labels are tiny (B*S int32): shift/pad them in the wrapper. The big
    # logits tensor is passed through untouched (no slice/reshape/pad HBM copy).
    shift_labels = labels[:, 1:].astype(jnp.int32)
    shift_labels = jnp.pad(shift_labels, ((0, 0), (0, s_pad - n_rows)),
                           constant_values=IGNORE_INDEX)
    shift_labels = shift_labels[:, :, None]  # (B, s_pad, 1)

    kernel = functools.partial(_ce_kernel, vocab_size=V, block_v=tv,
                               mask_vocab_tail=mask_vocab_tail)

    out = pl.pallas_call(
        kernel,
        out_shape=jax.ShapeDtypeStruct((s_pad, 1), jnp.float32),
        grid_spec=pltpu.PrefetchScalarGridSpec(
            num_scalar_prefetch=0,
            grid=(n_seq_tiles, B, n_vocab_tiles),
            in_specs=[
                # logits (B, S, V): rows [si*TM, si*TM+TM) x lanes [vi*TV, ...).
                pl.BlockSpec((None, tm, tv), lambda si, b, vi: (b, si, vi)),
                # shifted labels (B, s_pad, 1)
                pl.BlockSpec((None, tm, 1), lambda si, b, vi: (b, si, 0)),
            ],
            out_specs=pl.BlockSpec((tm, 1), lambda si, b, vi: (si, 0)),
            scratch_shapes=[
                pltpu.VMEM((tm, 1), jnp.float32),  # running max
                pltpu.VMEM((tm, 1), jnp.float32),  # running sum(exp)
                pltpu.VMEM((tm, 1), jnp.float32),  # target logit
            ],
        ),
        compiler_params=pltpu.CompilerParams(
            dimension_semantics=("parallel", "arbitrary", "arbitrary"),
            vmem_limit_bytes=32 * 1024 * 1024,
        ),
    )(logits, shift_labels)

    # Sample average: divide by batch size (matches `loss /= labels.shape[0]`).
    return out[:n_rows, 0] / B


def _reference(logits, labels):
    """Pure-JAX reference mirroring the PyTorch module exactly."""
    B = logits.shape[0]
    sl = logits[:, :-1, :].astype(jnp.float32)          # (B, S-1, V)
    st = labels[:, 1:]                                  # (B, S-1)
    logp = jax.nn.log_softmax(sl, axis=-1)
    tgt = jnp.take_along_axis(logp, jnp.maximum(st, 0)[..., None], axis=-1)[..., 0]
    per_tok = jnp.where(st != IGNORE_INDEX, -tgt, 0.0)  # reduction='none'
    return jnp.sum(per_tok, axis=0) / B                 # (S-1,)


if __name__ == "__main__":
    key = jax.random.PRNGKey(0)

    cases = [
        # (B, S, V, dtype, atol): single vocab tile / multi-tile + ragged tail /
        # bf16 stream with a divisor vocab tile.
        (2, 9, 128, jnp.float32, 1e-5),
        (2, 17, 4250, jnp.float32, 1e-5),
        (2, 17, 4224, jnp.bfloat16, 1e-4),
    ]
    for B, S, V, dtype, atol in cases:
        key, k1, k2 = jax.random.split(key, 3)
        logits = jax.random.normal(k1, (B, S, V), dtype=dtype)
        labels = jax.random.randint(k2, (B, S), 0, V, dtype=jnp.int32)
        labels = labels.at[0, 3].set(IGNORE_INDEX)  # exercise ignore_index

        loss = jax.block_until_ready(
            sample_averaged_cross_entropy_loss(logits, labels))
        ref = _reference(logits, labels)

        assert loss.shape == (S - 1,), (loss.shape, S)
        assert jnp.allclose(loss, ref, atol=atol, rtol=atol), (dtype, V, loss, ref)

    print("KERNEL_OK")
</pallas_src>

<mosaic_0001>
module attributes {stable_mosaic.version = 11 : i64} {
  func.func @_ce_kernel(%arg0: i32, %arg1: i32, %arg2: i32, %arg3: memref<1x8x128xf32, #tpu.memory_space<vmem>>, %arg4: memref<1x8x1xi32, #tpu.memory_space<vmem>>, %arg5: memref<8x1xf32, #tpu.memory_space<vmem>>, %arg6: memref<8x1xf32, #tpu.memory_space<vmem>>, %arg7: memref<8x1xf32, #tpu.memory_space<vmem>>, %arg8: memref<8x1xf32, #tpu.memory_space<vmem>>) attributes {dimension_semantics = [#tpu.dimension_semantics<parallel>, #tpu.dimension_semantics<arbitrary>, #tpu.dimension_semantics<arbitrary>], iteration_bounds = array<i64: 1, 2, 1>, scalar_prefetch = 0 : i64, scratch_operands = 3 : i64, tpu.core_type = #tpu.core_type<tc>, window_params = [{transform_indices = @transform_0, window_bounds = array<i64: 1, 8, 128>}, {transform_indices = @transform_1, window_bounds = array<i64: 1, 8, 1>}, {transform_indices = @transform_2, window_bounds = array<i64: 8, 1>}]} {
    %c0_i32 = arith.constant 0 : i32
    %0 = arith.cmpi eq, %arg1, %c0_i32 : i32
    %c0_i32_0 = arith.constant 0 : i32
    %1 = arith.cmpi eq, %arg2, %c0_i32_0 : i32
    %2 = arith.andi %0, %1 : i1
    %3 = arith.extui %2 : i1 to i32
    %c0_i32_1 = arith.constant 0 : i32
    %4 = arith.cmpi ne, %3, %c0_i32_1 : i32
    scf.if %4 {
      %cst_26 = arith.constant 0.000000e+00 : f32
      %44 = vector.broadcast %cst_26 : f32 to vector<8x1xf32>
      %c0_27 = arith.constant 0 : index
      %c0_28 = arith.constant 0 : index
      %45 = vector.load %arg5[%c0_27, %c0_28] : memref<8x1xf32, #tpu.memory_space<vmem>>, vector<8x1xf32>
      tpu.vector_store %arg5[%c0_27, %c0_28], %44 {strides = array<i32>} : memref<8x1xf32, #tpu.memory_space<vmem>>, vector<8x1xf32>,
    } else {
    }
    %c0_i32_2 = arith.constant 0 : i32
    %5 = arith.cmpi eq, %arg2, %c0_i32_2 : i32
    %6 = arith.extui %5 : i1 to i32
    %c0_i32_3 = arith.constant 0 : i32
    %7 = arith.cmpi ne, %6, %c0_i32_3 : i32
    scf.if %7 {
      %cst_26 = arith.constant 0xFF800000 : f32
      %44 = vector.broadcast %cst_26 : f32 to vector<8x1xf32>
      %c0_27 = arith.constant 0 : index
      %c0_28 = arith.constant 0 : index
      %45 = vector.load %arg6[%c0_27, %c0_28] : memref<8x1xf32, #tpu.memory_space<vmem>>, vector<8x1xf32>
      tpu.vector_store %arg6[%c0_27, %c0_28], %44 {strides = array<i32>} : memref<8x1xf32, #tpu.memory_space<vmem>>, vector<8x1xf32>,
      %cst_29 = arith.constant 0.000000e+00 : f32
      %46 = vector.broadcast %cst_29 : f32 to vector<8x1xf32>
      %c0_30 = arith.constant 0 : index
      %c0_31 = arith.constant 0 : index
      %47 = vector.load %arg7[%c0_30, %c0_31] : memref<8x1xf32, #tpu.memory_space<vmem>>, vector<8x1xf32>
      tpu.vector_store %arg7[%c0_30, %c0_31], %46 {strides = array<i32>} : memref<8x1xf32, #tpu.memory_space<vmem>>, vector<8x1xf32>,
      %cst_32 = arith.constant 0.000000e+00 : f32
      %48 = vector.broadcast %cst_32 : f32 to vector<8x1xf32>
      %c0_33 = arith.constant 0 : index
      %c0_34 = arith.constant 0 : index
      %49 = vector.load %arg8[%c0_33, %c0_34] : memref<8x1xf32, #tpu.memory_space<vmem>>, vector<8x1xf32>
      tpu.vector_store %arg8[%c0_33, %c0_34], %48 {strides = array<i32>} : memref<8x1xf32, #tpu.memory_space<vmem>>, vector<8x1xf32>,
    } else {
    }
    %c0 = arith.constant 0 : index
    %c0_4 = arith.constant 0 : index
    %c0_5 = arith.constant 0 : index
    %8 = vector.load %arg3[%c0, %c0_4, %c0_5] : memref<1x8x128xf32, #tpu.memory_space<vmem>>, vector<1x8x128xf32>
    %9 = vector.shape_cast %8 : vector<1x8x128xf32> to vector<8x128xf32>
    %c0_6 = arith.constant 0 : index
    %c0_7 = arith.constant 0 : index
    %c0_8 = arith.constant 0 : index
    %10 = vector.load %arg4[%c0_6, %c0_7, %c0_8] : memref<1x8x1xi32, #tpu.memory_space<vmem>>, vector<1x8x1xi32>
    %11 = vector.shape_cast %10 : vector<1x8x1xi32> to vector<8x1xi32>
    %12 = tpu.iota {dimensions = array<i32: 1>} : vector<8x128xi32>
    %c128_i32 = arith.constant 128 : i32
    %13 = arith.muli %arg2, %c128_i32 : i32
    %c0_9 = arith.constant 0 : index
    %c0_10 = arith.constant 0 : index
    %14 = vector.load %arg6[%c0_9, %c0_10] : memref<8x1xf32, #tpu.memory_space<vmem>>, vector<8x1xf32>
    %cst = arith.constant dense<0xFF800000> : vector<8xf32>
    %15 = vector.multi_reduction <maximumf>, %9, %cst [1] : vector<8x128xf32> to vector<8xf32>
    %16 = vector.shape_cast %15 : vector<8xf32> to vector<8x1xf32>
    %17 = arith.maximumf %14, %16 : vector<8x1xf32>
    %c0_11 = arith.constant 0 : index
    %c0_12 = arith.constant 0 : index
    %18 = vector.load %arg7[%c0_11, %c0_12] : memref<8x1xf32, #tpu.memory_space<vmem>>, vector<8x1xf32>
    %19 = arith.subf %14, %17 : vector<8x1xf32>
    %20 = math.exp %19 : vector<8x1xf32>
    %21 = arith.mulf %18, %20 : vector<8x1xf32>
    %22 = vector.broadcast %17 : vector<8x1xf32> to vector<8x128xf32>
    %23 = arith.subf %9, %22 : vector<8x128xf32>
    %24 = math.exp %23 : vector<8x128xf32>
    %cst_13 = arith.constant dense<0.000000e+00> : vector<8xf32>
    %25 = vector.multi_reduction <add>, %24, %cst_13 [1] : vector<8x128xf32> to vector<8xf32>
    %26 = vector.shape_cast %25 : vector<8xf32> to vector<8x1xf32>
    %27 = arith.addf %21, %26 : vector<8x1xf32>
    %c0_14 = arith.constant 0 : index
    %c0_15 = arith.constant 0 : index
    %28 = vector.load %arg7[%c0_14, %c0_15] : memref<8x1xf32, #tpu.memory_space<vmem>>, vector<8x1xf32>
    tpu.vector_store %arg7[%c0_14, %c0_15], %27 {strides = array<i32>} : memref<8x1xf32, #tpu.memory_space<vmem>>, vector<8x1xf32>,
    %c0_16 = arith.constant 0 : index
    %c0_17 = arith.constant 0 : index
    %29 = vector.load %arg6[%c0_16, %c0_17] : memref<8x1xf32, #tpu.memory_space<vmem>>, vector<8x1xf32>
    tpu.vector_store %arg6[%c0_16, %c0_17], %17 {strides = array<i32>} : memref<8x1xf32, #tpu.memory_space<vmem>>, vector<8x1xf32>,
    %c0_18 = arith.constant 0 : index
    %c0_19 = arith.constant 0 : index
    %30 = vector.load %arg8[%c0_18, %c0_19] : memref<8x1xf32, #tpu.memory_space<vmem>>, vector<8x1xf32>
    %31 = vector.broadcast %13 : i32 to vector<8x1xi32>
    %32 = arith.subi %11, %31 : vector<8x1xi32>
    %33 = vector.broadcast %32 : vector<8x1xi32> to vector<8x128xi32>
    %34 = arith.cmpi eq, %12, %33 : vector<8x128xi32>
    %cst_20 = arith.constant 0.000000e+00 : f32
    %35 = vector.broadcast %cst_20 : f32 to vector<8x128xf32>
    %36 = arith.select %34, %9, %35 : vector<8x128xi1>, vector<8x128xf32>
    %cst_21 = arith.constant dense<0.000000e+00> : vector<8xf32>
    %37 = vector.multi_reduction <add>, %36, %cst_21 [1] : vector<8x128xf32> to vector<8xf32>
    %38 = vector.shape_cast %37 : vector<8xf32> to vector<8x1xf32>
    %39 = arith.addf %30, %38 : vector<8x1xf32>
    %c0_22 = arith.constant 0 : index
    %c0_23 = arith.constant 0 : index
    %40 = vector.load %arg8[%c0_22, %c0_23] : memref<8x1xf32, #tpu.memory_space<vmem>>, vector<8x1xf32>
    tpu.vector_store %arg8[%c0_22, %c0_23], %39 {strides = array<i32>} : memref<8x1xf32, #tpu.memory_space<vmem>>, vector<8x1xf32>,
    %c0_i32_24 = arith.constant 0 : i32
    %41 = arith.cmpi eq, %arg2, %c0_i32_24 : i32
    %42 = arith.extui %41 : i1 to i32
    %c0_i32_25 = arith.constant 0 : i32
    %43 = arith.cmpi ne, %42, %c0_i32_25 : i32
    scf.if %43 {
      %c0_26 = arith.constant 0 : index
      %c0_27 = arith.constant 0 : index
      %44 = vector.load %arg7[%c0_26, %c0_27] : memref<8x1xf32, #tpu.memory_space<vmem>>, vector<8x1xf32>
      %45 = math.log %44 : vector<8x1xf32>
      %c0_28 = arith.constant 0 : index
      %c0_29 = arith.constant 0 : index
      %46 = vector.load %arg6[%c0_28, %c0_29] : memref<8x1xf32, #tpu.memory_space<vmem>>, vector<8x1xf32>
      %47 = arith.addf %45, %46 : vector<8x1xf32>
      %c-100_i32 = arith.constant -100 : i32
      %48 = vector.broadcast %c-100_i32 : i32 to vector<8x1xi32>
      %49 = arith.cmpi ne, %11, %48 : vector<8x1xi32>
      %c0_30 = arith.constant 0 : index
      %c0_31 = arith.constant 0 : index
      %50 = vector.load %arg5[%c0_30, %c0_31] : memref<8x1xf32, #tpu.memory_space<vmem>>, vector<8x1xf32>
      %c0_32 = arith.constant 0 : index
      %c0_33 = arith.constant 0 : index
      %51 = vector.load %arg8[%c0_32, %c0_33] : memref<8x1xf32, #tpu.memory_space<vmem>>, vector<8x1xf32>
      %52 = arith.subf %47, %51 : vector<8x1xf32>
      %cst_34 = arith.constant 0.000000e+00 : f32
      %53 = vector.broadcast %cst_34 : f32 to vector<8x1xf32>
      %54 = arith.select %49, %52, %53 : vector<8x1xi1>, vector<8x1xf32>
      %55 = arith.addf %50, %54 : vector<8x1xf32>
      %c0_35 = arith.constant 0 : index
      %c0_36 = arith.constant 0 : index
      %56 = vector.load %arg5[%c0_35, %c0_36] : memref<8x1xf32, #tpu.memory_space<vmem>>, vector<8x1xf32>
      tpu.vector_store %arg5[%c0_35, %c0_36], %55 {strides = array<i32>} : memref<8x1xf32, #tpu.memory_space<vmem>>, vector<8x1xf32>,
    } else {
    }
    return
  }
  func.func @transform_0(%arg0: i32, %arg1: i32, %arg2: i32) -> (i32, i32, i32) {
    %c0_i32 = arith.constant 0 : i32
    return %arg1, %arg0, %arg2 : i32, i32, i32
  }
  func.func @transform_1(%arg0: i32, %arg1: i32, %arg2: i32) -> (i32, i32, i32) {
    %c0_i32 = arith.constant 0 : i32
    %c0_i32_0 = arith.constant 0 : i32
    return %arg1, %arg0, %c0_i32 : i32, i32, i32
  }
  func.func @transform_2(%arg0: i32, %arg1: i32, %arg2: i32) -> (i32, i32) {
    %c0_i32 = arith.constant 0 : i32
    %c0_i32_0 = arith.constant 0 : i32
    return %arg0, %c0_i32 : i32, i32
  }
}

</mosaic_0001>

<llo_original>
// kernel: sample_averaged_cross_entropy_loss.1
$region0: #{sample_averaged_cross_entropy_loss.1}
  #allocation0 [shape = 'u32[]', space=smem, size = 0x4, offset = 0x4, fixed_abs, tag = 'smem constant byte address 0x4 - core index']
  #allocation1 [shape = 'u32[72,128]{1,0:T(1,128)}', space=vmem, size = 0x9000, scoped, tag = 'internal scratch']
  #allocation2 [shape = 'f32[8,1]{1,0:T(8,128)}', space=vmem, size = 0x1000, scoped, tag = 'scratch operand']
  #allocation3 [shape = 'f32[8,1]{1,0:T(8,128)}', space=vmem, size = 0x1000, scoped, tag = 'scratch operand']
  #allocation4 [shape = 'f32[8,1]{1,0:T(8,128)}', space=vmem, size = 0x1000, scoped, tag = 'scratch operand']
  %s0 = inlined_call_operand.vmem [shape: f32[2,9,128], index: 0, kind: input, shape index: {}]
  %s1 = inlined_call_operand.vmem [shape: s32[2,8,1], index: 1, kind: input, shape index: {}]
  %s2 = inlined_call_operand.vmem [shape: f32[8,1], index: 2, kind: output, shape index: {}]
  %s3 = sld [smem:[#allocation0]]
  $region53: #{sample_averaged_cross_entropy_loss.1} parent=0
    _
  %s5 = ssub.s32 1, %s3
  %s6 = scalar_select 0, %s5, %s3
  loop: start=0, step=1, limit=4
  $region2: #{sample_averaged_cross_entropy_loss.1} parent=0 // loop_pre_header
    _
  $region3: #{sample_averaged_cross_entropy_loss.1} parent=0 // loop_header
    %s8 = sphi 0, %s12
    %p9 = scmp.ge.s32.totalorder %s8, 4
    %s15 = sphi 0, %s34
    %s16 = sphi 0, %s30
    %s17 = sphi 0, %s26
    %s18 = sphi 0, %s15
    %s19 = sphi 0, %s16
    %s20 = sphi 0, %s17
    %s21 = sphi 0, %s18
    %s22 = sphi 0, %s19
    %s23 = sphi 0, %s20
    %s41 = sphi 0, %s43
    %s44 = sphi 0, %s41
    %s45 = sphi 0, %s44
    %s61 = sphi 0, %s45
    %s69 = sphi 0, %s71
    %s72 = sphi 0, %s69
    %s73 = sphi 0, %s72
    %s89 = sphi 0, %s73
    %s95 = sphi 0, %s97
    %s98 = sphi 0, %s95
    %s99 = sphi 0, %s98
    %s115 = sphi 0, %s99
  $region4: #{sample_averaged_cross_entropy_loss.1} parent=0 // loop_header_branch
    %11 = sbr.rel (%p9) target = $region8
  $region5: #{sample_averaged_cross_entropy_loss.1} parent=0 // loop_body
    %s13 = ssub.s32 %s8, 1
    %s14 = ssub.s32 %s8, 2
    %s24 = sadd.s32 1, %s17
    %p25 = scmp.ge.s32.totalorder %s24, 1
    %s26 = scalar_select %p25, 0, %s24
    %s27 = sadd.s32 1, %s16
    %s28 = scalar_select %p25, %s27, %s16
    %p29 = scmp.ge.s32.totalorder %s28, 2
    %s30 = scalar_select %p29, 0, %s28
    %s31 = sadd.s32 1, %s15
    %s32 = scalar_select %p29, %s31, %s15
    %p33 = scmp.ge.s32.totalorder %s32, 1
    %s34 = scalar_select %p33, 0, %s32
    %s35 = ssub.s32 %s16, %s30
    %s36 = ssub.s32 %s15, %s34
    %s37 = sor.u32 %s35, %s36
    %s38 = ssub.s32 %s17, %s26
    %s39 = sor.u32 %s37, %s38
    %p40 = scmp.eq.s32.totalorder %s39, 0
    %s42 = sadd.s32 %s41, 1
    %s43 = scalar_select %p40, %s41, %s42
    %p46 = pneg %p40
    %p47 = scmp.eq.s32.totalorder %s8, 1
    %p48 = por %p46, %p47
    %p49 = scmp.ne.s32.totalorder %s41, %s44
    %p50 = scmp.eq.s32.totalorder %s8, 0
    %p51 = por %p49, %p50
    %p52 = scmp.ne.s32.totalorder %s41, %s44
    %p53 = scmp.eq.s32.totalorder %s13, 1
    %p54 = por %p52, %p53
    %p55 = scmp.ne.s32.totalorder %s44, %s45
    %p56 = scmp.eq.s32.totalorder %s13, 0
    %p57 = por %p55, %p56
    %p58 = scmp.ne.s32.totalorder %s44, %s45
    %p59 = scmp.eq.s32.totalorder %s14, 1
    %p60 = por %p58, %p59
    %p62 = scmp.ne.s32.totalorder %s45, %s61
    %p63 = scmp.eq.s32.totalorder %s14, 0
    %p64 = por %p62, %p63
    %s65 = ssub.s32 %s16, %s30
    %s66 = ssub.s32 %s15, %s34
    %s67 = sor.u32 %s65, %s66
    %p68 = scmp.eq.s32.totalorder %s67, 0
    %s70 = sadd.s32 %s69, 1
    %s71 = scalar_select %p68, %s69, %s70
    %p74 = pneg %p68
    %p75 = scmp.eq.s32.totalorder %s8, 1
    %p76 = por %p74, %p75
    %p77 = scmp.ne.s32.totalorder %s69, %s72
    %p78 = scmp.eq.s32.totalorder %s8, 0
    %p79 = por %p77, %p78
    %p80 = scmp.ne.s32.totalorder %s69, %s72
    %p81 = scmp.eq.s32.totalorder %s13, 1
    %p82 = por %p80, %p81
    %p83 = scmp.ne.s32.totalorder %s72, %s73
    %p84 = scmp.eq.s32.totalorder %s13, 0
    %p85 = por %p83, %p84
    %p86 = scmp.ne.s32.totalorder %s72, %s73
    %p87 = scmp.eq.s32.totalorder %s14, 1
    %p88 = por %p86, %p87
    %p90 = scmp.ne.s32.totalorder %s73, %s89
    %p91 = scmp.eq.s32.totalorder %s14, 0
    %p92 = por %p90, %p91
    %s93 = ssub.s32 %s15, %s34
    %p94 = scmp.eq.s32.totalorder %s93, 0
    %s96 = sadd.s32 %s95, 1
    %s97 = scalar_select %p94, %s95, %s96
    %p100 = pneg %p94
    %p101 = scmp.eq.s32.totalorder %s8, 1
    %p102 = por %p100, %p101
    %p103 = scmp.ne.s32.totalorder %s95, %s98
    %p104 = scmp.eq.s32.totalorder %s8, 0
    %p105 = por %p103, %p104
    %p106 = scmp.ne.s32.totalorder %s95, %s98
    %p107 = scmp.eq.s32.totalorder %s13, 1
    %p108 = por %p106, %p107
    %p109 = scmp.ne.s32.totalorder %s98, %s99
    %p110 = scmp.eq.s32.totalorder %s13, 0
    %p111 = por %p109, %p110
    %p112 = scmp.ne.s32.totalorder %s98, %s99
    %p113 = scmp.eq.s32.totalorder %s14, 1
    %p114 = por %p112, %p113
    %p116 = scmp.ne.s32.totalorder %s99, %s115
    %p117 = scmp.eq.s32.totalorder %s14, 0
    %p118 = por %p116, %p117
    %p119 = scmp.le.s32.totalorder 1, %s8
    %p120 = scmp.lt.s32.totalorder %s8, 3
    %p121 = pnand %p119, %p120
    %p122 = pneg %p121
    // Predicated region
    $region9: #{sample_averaged_cross_entropy_loss.1} parent=5 // pred_check
      _
    $region10: #{sample_averaged_cross_entropy_loss.1} parent=5 // pred_check_branch
      %124 = sbr.rel (%p121) target = $region12
    $region11: #{sample_averaged_cross_entropy_loss.1} parent=5 // pred_region
      %s125 = ssub.s32 %s8, 1
    $region12: #{sample_averaged_cross_entropy_loss.1} parent=5 // pred_fallthru
      _
    %p126 = scmp.lt.s32.totalorder %s8, 2
    // Predicated region
    $region13: #{sample_averaged_cross_entropy_loss.1} parent=5 // pred_check
      %p127 = pneg %p126
    $region14: #{sample_averaged_cross_entropy_loss.1} parent=5 // pred_check_branch
      %129 = sbr.rel (%p127) target = $region16
    $region15: #{sample_averaged_cross_entropy_loss.1} parent=5 // pred_region
      // Predicated region
      $region17: #{sample_averaged_cross_entropy_loss.1} parent=15 // pred_check
        %p130 = pneg %p51
      $region18: #{sample_averaged_cross_entropy_loss.1} parent=15 // pred_check_branch
        %132 = sbr.rel (%p130) target = $region20
      $region19: #{sample_averaged_cross_entropy_loss.1} parent=15 // pred_region
        %p133 = scmp.lt.s32.totalorder %s16, 1
        %s134 = scalar_select %p133, %s16, 1
        %p135 = scmp.lt.s32.totalorder %s15, 1
        %s136 = scalar_select %p135, %s15, 1
        %p137 = scmp.lt.s32.totalorder %s17, 0
        %s138 = scalar_select %p137, %s17, 0
        %s139 = sadd.s32 %s138, %s136
        %s140 = smul.addr %s134, 2
        %s141 = sadd.s32 %s139, %s140
        %s142 = smul.addr %s141, 8
        %s143 = scalar_lea.vmem %s0, %s142
      $region20: #{sample_averaged_cross_entropy_loss.1} parent=15 // pred_fallthru
        _
      // Predicated region
      $region21: #{sample_averaged_cross_entropy_loss.1} parent=15 // pred_check
        %p144 = pneg %p79
      $region22: #{sample_averaged_cross_entropy_loss.1} parent=15 // pred_check_branch
        %146 = sbr.rel (%p144) target = $region24
      $region23: #{sample_averaged_cross_entropy_loss.1} parent=15 // pred_region
        %p147 = scmp.lt.s32.totalorder %s16, 1
        %s148 = scalar_select %p147, %s16, 1
        %p149 = scmp.lt.s32.totalorder %s15, 0
        %s150 = scalar_select %p149, %s15, 0
        %s151 = sadd.s32 %s150, %s148
        %s152 = smul.addr %s151, 8
        %s153 = scalar_lea.vmem %s1, %s152
      $region24: #{sample_averaged_cross_entropy_loss.1} parent=15 // pred_fallthru
        _
    $region16: #{sample_averaged_cross_entropy_loss.1} parent=5 // pred_fallthru
      _
    %p154 = scmp.le.s32.totalorder 1, %s8
    %p155 = scmp.lt.s32.totalorder %s8, 3
    %p156 = pnand %p154, %p155
    %p157 = pneg %p156
    // Predicated region
    $region25: #{sample_averaged_cross_entropy_loss.1} parent=5 // pred_check
      _
    $region26: #{sample_averaged_cross_entropy_loss.1} parent=5 // pred_check_branch
      %159 = sbr.rel (%p156) target = $region28
    $region27: #{sample_averaged_cross_entropy_loss.1} parent=5 // pred_region
      %s160 = ssub.s32 %s8, 1
      %p161 = scmp.lt.s32.totalorder %s19, 1
      %s162 = scalar_select %p161, %s19, 1
      %p163 = scmp.lt.s32.totalorder %s18, 1
      %s164 = scalar_select %p163, %s18, 1
      %p165 = scmp.lt.s32.totalorder %s20, 0
      %s166 = scalar_select %p165, %s20, 0
      %s167 = sadd.s32 %s166, %s164
      %s168 = smul.addr %s162, 2
      %s169 = sadd.s32 %s167, %s168
      %s170 = smul.addr %s169, 8
      %s171 = scalar_lea.vmem %s0, %s170
      %p172 = pneg %p57
      %p173 = pneg %p54
      %p174 = scmp.lt.s32.totalorder %s19, 1
      %s175 = scalar_select %p174, %s19, 1
      %p176 = scmp.lt.s32.totalorder %s18, 0
      %s177 = scalar_select %p176, %s18, 0
      %s178 = sadd.s32 %s177, %s175
      %s179 = smul.addr %s178, 8
      %s180 = scalar_lea.vmem %s1, %s179
      %p181 = pneg %p85
      %p182 = pneg %p82
      %p183 = pneg %p111
      %p184 = pneg %p108
      %p185 = scmp.lt.s32.totalorder %s18, 0
      %s186 = scalar_select %p185, %s18, 0
      %s187 = smul.addr %s186, 8
      %s188 = scalar_lea.vmem %s2, %s187
      %p189 = scmp.lt.s32.totalorder %s19, 1
      %s190 = scalar_select %p189, %s19, 1
      %p191 = scmp.lt.s32.totalorder %s18, 1
      %s192 = scalar_select %p191, %s18, 1
      %p193 = scmp.lt.s32.totalorder %s20, 0
      %s194 = scalar_select %p193, %s20, 0
      %s195 = sadd.s32 %s194, %s192
      %s196 = smul.addr %s190, 2
      %s197 = sadd.s32 %s195, %s196
      %s198 = smul.addr %s197, 8
      %s199 = scalar_lea.vmem %s0, %s198
      %p200 = scmp.lt.s32.totalorder %s19, 1
      %s201 = scalar_select %p200, %s19, 1
      %p202 = scmp.lt.s32.totalorder %s18, 0
      %s203 = scalar_select %p202, %s18, 0
      %s204 = sadd.s32 %s203, %s201
      %s205 = smul.addr %s204, 8
      %s206 = scalar_lea.vmem %s1, %s205
      %p207 = scmp.lt.s32.totalorder %s18, 0
      %s208 = scalar_select %p207, %s18, 0
      %s209 = smul.addr %s208, 8
      %s210 = scalar_lea.vmem %s2, %s209
      %p211 = scmp.eq.s32.totalorder %s19, 0
      %p212 = scmp.eq.s32.totalorder %s20, 0
      %p213 = pnand %p211, %p212
      %p214 = pneg %p213
      // Predicated region
      $region29: #{sample_averaged_cross_entropy_loss.1} parent=27 // pred_check
        _
      $region30: #{sample_averaged_cross_entropy_loss.1} parent=27 // pred_check_branch
        %216 = sbr.rel (%p213) target = $region32
      $region31: #{sample_averaged_cross_entropy_loss.1} parent=27 // pred_region
        %vm217 = vcmask 7168
        %218 = vst.msk [vmem:[%s210] sm:$0xff] %vm217, 0.0
      $region32: #{sample_averaged_cross_entropy_loss.1} parent=27 // pred_fallthru
        _
      // Predicated region
      $region33: #{sample_averaged_cross_entropy_loss.1} parent=27 // pred_check
        %p219 = pneg %p212
      $region34: #{sample_averaged_cross_entropy_loss.1} parent=27 // pred_check_branch
        %221 = sbr.rel (%p219) target = $region36
      $region35: #{sample_averaged_cross_entropy_loss.1} parent=27 // pred_region
        %vm222 = vcmask 7168
        %223 = vst.msk [vmem:[#allocation2] sm:$0xff] %vm222, -inf
        %224 = vst.msk [vmem:[#allocation3] sm:$0xff] %vm222, 0.0
        %225 = vst.msk [vmem:[#allocation4] sm:$0xff] %vm222, 0.0
      $region36: #{sample_averaged_cross_entropy_loss.1} parent=27 // pred_fallthru
        _
      %v226 = vld [vmem:[%s199] sm:$0xff]
      %v227 = vld [vmem:[%s206] sm:$0xff]
      %v228 = vlaneseq
      %v229 = vand.u32 %v228, 127
      %s230 = smul.u32 %s20, 128
      %v231 = vld [vmem:[#allocation2] sm:$0xff]
      %232 = vmax.xlane.f32.xlu0 %v226
      %v233 = vpop.xlane.xlu0 %232
      %v234 = vmax.f32 %v231, %v233
      %v235 = vld [vmem:[#allocation3] sm:$0xff]
      %v236 = vsub.f32 %v231, %v234
      %v237 = vmul.f32 %v236, 1.442695
      %v238 = vpow.pop %v237
      %v239 = vmul.f32 %v235, %v238
      %241 = vset.pattern.permute.xlu0 0
      %242 = vperm.xlu0 %241, %v234
      %v243 = vpop.permute.xlu0 %242
      %v245 = vsub.f32 %v226, %v243
      %v246 = vmul.f32 %v245, 1.442695
      %v247 = vpow.pop %v246
      %248 = vadd.xlane.f32.xlu0 %v247
      %v249 = vpop.xlane.xlu0 %248
      %v250 = vadd.f32 %v239, %v249
      %vm251 = vcmask 7168
      %252 = vst.msk [vmem:[#allocation3] sm:$0xff] %vm251, %v250
      %253 = vst.msk [vmem:[#allocation2] sm:$0xff] %vm251, %v234
      %v254 = vld [vmem:[#allocation4] sm:$0xff]
      %v255 = vstv %s230
      %v256 = vsub.s32 %v227, %v255
      %257 = vset.pattern.permute.xlu0 0
      %258 = vperm.xlu0 %257, %v256
      %v259 = vpop.permute.xlu0 %258
      %vm260 = vcmp.eq.s32.totalorder %v229, %v259
      %v261 = vsel %vm260, %v226, 0.0
      %262 = vadd.xlane.f32.xlu0 %v261
      %v263 = vpop.xlane.xlu0 %262
      %v264 = vadd.f32 %v254, %v263
      %265 = vst.msk [vmem:[#allocation4] sm:$0xff] %vm251, %v264
      // Predicated region
      $region37: #{sample_averaged_cross_entropy_loss.1} parent=27 // pred_check
        %p266 = pneg %p212
      $region38: #{sample_averaged_cross_entropy_loss.1} parent=27 // pred_check_branch
        %268 = sbr.rel (%p266) target = $region40
      $region39: #{sample_averaged_cross_entropy_loss.1} parent=27 // pred_region
        %v269 = vld [vmem:[#allocation3] sm:$0xff]
        %v270 = vlog2.pop %v269
        %v271 = vmul.f32 %v270, 0.6931472
        %v272 = vld [vmem:[#allocation2] sm:$0xff]
        %v273 = vadd.f32 %v271, %v272
        %vm274 = vcmp.ne.s32.totalorder %v227, 4294967196
        %v275 = vld [vmem:[%s210] sm:$0xff]
        %v276 = vld [vmem:[#allocation4] sm:$0xff]
        %v277 = vsub.f32 %v273, %v276
        %v278 = vsel %vm274, %v277, 0.0
        %v279 = vadd.f32 %v275, %v278
        %280 = vst.msk [vmem:[%s210] sm:$0xff] %vm251, %v279
      $region40: #{sample_averaged_cross_entropy_loss.1} parent=27 // pred_fallthru
        _
      %p281 = scmp.lt.s32.totalorder %s18, 0
      %s282 = scalar_select %p281, %s18, 0
      %s283 = smul.addr %s282, 8
      %s284 = scalar_lea.vmem %s2, %s283
      // Predicated region
      $region41: #{sample_averaged_cross_entropy_loss.1} parent=27 // pred_check
        %p285 = pneg %p108
      $region42: #{sample_averaged_cross_entropy_loss.1} parent=27 // pred_check_branch
        %287 = sbr.rel (%p285) target = $region44
      $region43: #{sample_averaged_cross_entropy_loss.1} parent=27 // pred_region
        _
      $region44: #{sample_averaged_cross_entropy_loss.1} parent=27 // pred_fallthru
        _
      // Predicated region
      $region45: #{sample_averaged_cross_entropy_loss.1} parent=27 // pred_check
        %p288 = pneg %p108
      $region46: #{sample_averaged_cross_entropy_loss.1} parent=27 // pred_check_branch
        %290 = sbr.rel (%p288) target = $region48
      $region47: #{sample_averaged_cross_entropy_loss.1} parent=27 // pred_region
        %p291 = scmp.lt.s32.totalorder %s18, 0
        %s292 = scalar_select %p291, %s18, 0
        %s293 = smul.addr %s292, 8
        %s294 = scalar_lea.vmem %s2, %s293
      $region48: #{sample_averaged_cross_entropy_loss.1} parent=27 // pred_fallthru
        _
    $region28: #{sample_averaged_cross_entropy_loss.1} parent=5 // pred_fallthru
      _
    %p295 = scmp.le.s32.totalorder 2, %s8
    // Predicated region
    $region49: #{sample_averaged_cross_entropy_loss.1} parent=5 // pred_check
      %p296 = pneg %p295
    $region50: #{sample_averaged_cross_entropy_loss.1} parent=5 // pred_check_branch
      %298 = sbr.rel (%p296) target = $region52
    $region51: #{sample_averaged_cross_entropy_loss.1} parent=5 // pred_region
      %s299 = ssub.s32 %s8, 2
    $region52: #{sample_averaged_cross_entropy_loss.1} parent=5 // pred_fallthru
      _
  $region6: #{sample_averaged_cross_entropy_loss.1} parent=0 // loop_footer
    %s12 = sadd.s32 1, %s8
  $region7: #{sample_averaged_cross_entropy_loss.1} parent=0 // loop_footer_branch
    %7 = sbr.rel target = $region3
  $region8: #{sample_averaged_cross_entropy_loss.1} parent=0 // loop_exit
    _

</llo_original>
